<compile_context>
chip_gen: v7x
topology: tpu7x:2x2x1
jax: 0.10.0
libtpu: 0.0.40
codegen_flags: <defaults>
</compile_context>

<pallas_src>
import math
import functools

import jax
import jax.numpy as jnp
from jax import lax
from jax.experimental import pallas as pl
from jax.experimental.pallas import tpu as pltpu


# Safe on v5e/v6e/v7x (>= v5e's 16 MiB scoped default, <= v7x physical VMEM).
_VMEM_LIMIT_BYTES = 32 * 1024 * 1024


def _pick_tile(dim, cap, align):
    """Largest divisor of `dim` that is <= cap and a multiple of `align`.

    Falls back to the full dim, which always satisfies the (8, 128) BlockSpec
    rule (full-extent blocks are exempt).  Lane (last) block dims must call
    this with align=128; sublane dims with align=8.
    """
    if dim <= cap:
        return dim
    best = None
    for cand in range(align, cap + 1, align):
        if dim % cand == 0:
            best = cand
    return best if best is not None else dim


# ----------------------------------------------------------------------------
# Tiled linear kernel: y = x @ W + b   (x: (M, K), W: (K, N), b: (1, N))
# Grid (M//tm, N//tn, K//tk); f32 accumulator in VMEM; bias added at finalize.
# ----------------------------------------------------------------------------
def _linear_kernel(x_ref, w_ref, b_ref, o_ref, acc_ref):
    @pl.when(pl.program_id(2) == 0)
    def _():
        acc_ref[...] = jnp.zeros_like(acc_ref)

    acc_ref[...] += jnp.dot(x_ref[...], w_ref[...],
                            preferred_element_type=jnp.float32)

    @pl.when(pl.program_id(2) == pl.num_programs(2) - 1)
    def _():
        o_ref[...] = (acc_ref[...] + b_ref[...]).astype(o_ref.dtype)


def pallas_linear(x2d, w, b, *, out_dtype=None,
                  tm_cap=512, tn_cap=512, tk_cap=1024):
    M, K = x2d.shape
    Kw, N = w.shape
    assert K == Kw
    out_dtype = out_dtype if out_dtype is not None else x2d.dtype

    tm = _pick_tile(M, tm_cap, 8)      # sublane dim of x / out blocks
    tn = _pick_tile(N, tn_cap, 128)    # lane dim of w / bias / out blocks
    tk = _pick_tile(K, tk_cap, 128)    # lane dim of x block, sublane of w
    grid = (M // tm, N // tn, K // tk)

    return pl.pallas_call(
        _linear_kernel,
        out_shape=jax.ShapeDtypeStruct((M, N), out_dtype),
        grid=grid,
        in_specs=[
            pl.BlockSpec((tm, tk), lambda i, j, k: (i, k)),
            pl.BlockSpec((tk, tn), lambda i, j, k: (k, j)),
            pl.BlockSpec((1, tn), lambda i, j, k: (0, j)),
        ],
        out_specs=pl.BlockSpec((tm, tn), lambda i, j, k: (i, j)),
        scratch_shapes=[pltpu.VMEM((tm, tn), jnp.float32)],
        compiler_params=pltpu.CompilerParams(
            dimension_semantics=("parallel", "parallel", "arbitrary"),
            vmem_limit_bytes=_VMEM_LIMIT_BYTES),
    )(x2d, w, b.reshape(1, N).astype(jnp.float32))


# ----------------------------------------------------------------------------
# Flash-style scaled dot-product attention on head-packed activations.
#
# Arrays stay in (B, S, D = H*dk) layout.  Grid (B, Sq//tq, Sk//tk), KV axis
# last ("arbitrary").  One program handles all H heads of its (q-tile, kv-tile)
# pair; per-head online-softmax state lives in (H, tq, *) VMEM scratch and the
# final store is a single lane-dense (tq, D) write.
# ----------------------------------------------------------------------------
def _flash_kernel(*refs, num_heads, d_k, is_causal, has_mask, mask_heads,
                  tq, tk):
    if has_mask:
        (q_ref, k_ref, v_ref, mask_ref, o_ref, m_ref, l_ref, acc_ref) = refs
    else:
        (q_ref, k_ref, v_ref, o_ref, m_ref, l_ref, acc_ref) = refs
        mask_ref = None

    qi = pl.program_id(1)
    ki = pl.program_id(2)

    @pl.when(ki == 0)
    def _():
        m_ref[...] = jnp.full_like(m_ref, -jnp.inf)
        l_ref[...] = jnp.zeros_like(l_ref)
        acc_ref[...] = jnp.zeros_like(acc_ref)

    def compute():
        q = q_ref[...]    # (tq, H*dk) lane-dense load; 1/sqrt(dk) already folded into W_q
        k = k_ref[...]    # (tk, H*dk)
        v = v_ref[...]    # (tk, H*dk)

        if is_causal:
            row_ids = qi * tq + lax.broadcasted_iota(jnp.int32, (tq, tk), 0)
            col_ids = ki * tk + lax.broadcasted_iota(jnp.int32, (tq, tk), 1)
            causal_ok = row_ids >= col_ids

        for h in range(num_heads):           # static unroll over heads
            lo = h * d_k
            q_h = q[:, lo:lo + d_k]           # (tq, dk)
            k_h = k[:, lo:lo + d_k]           # (tk, dk)
            v_h = v[:, lo:lo + d_k]           # (tk, dk)

            # QK^T without an explicit transpose: contract the last axes.
            s = lax.dot_general(
                q_h, k_h,
                dimension_numbers=(((1,), (1,)), ((), ())),
                preferred_element_type=jnp.float32)          # (tq, tk) f32

            if has_mask:
                mt = mask_ref[h if mask_heads > 1 else 0]     # (tq, tk) int8
                s = jnp.where(mt == 0, jnp.float32(-1e9), s)
            if is_causal:
                s = jnp.where(causal_ok, s, jnp.float32(-1e9))

            m_prev = m_ref[h]                                 # (tq, 1)
            m_new = jnp.maximum(m_prev, jnp.max(s, axis=-1, keepdims=True))
            alpha = jnp.exp(m_prev - m_new)
            p = jnp.exp(s - m_new)

            l_ref[h] = alpha * l_ref[h] + jnp.sum(p, axis=-1, keepdims=True)
            acc_ref[h] = alpha * acc_ref[h] + jnp.dot(
                p.astype(v_h.dtype), v_h, preferred_element_type=jnp.float32)
            m_ref[h] = m_new

    if is_causal:
        # Skip KV tiles that lie entirely above the diagonal.
        @pl.when(ki * tk < (qi + 1) * tq)
        def _():
            compute()
    else:
        compute()

    @pl.when(ki == pl.num_programs(2) - 1)
    def _():
        outs = []
        for h in range(num_heads):
            inv_l = pl.reciprocal(l_ref[h], approx=False)     # once per Q tile
            outs.append(acc_ref[h] * inv_l)
        # Single lane-dense (tq, D) store (no per-KV-step masked writebacks).
        o_ref[...] = jnp.concatenate(outs, axis=-1).astype(o_ref.dtype)


def _prep_mask(mask, Sq, Sk):
    """Keep batch/head axes un-broadcast; broadcast only over Sq/Sk; int8."""
    m = jnp.asarray(mask)
    if m.ndim < 4:
        m = m.reshape((1,) * (4 - m.ndim) + m.shape)
    Bm, Hm = int(m.shape[0]), int(m.shape[1])
    m = jnp.broadcast_to(m, (Bm, Hm, Sq, Sk))
    return (m != 0).astype(jnp.int8), Bm, Hm


def pallas_sdpa(q, k, v, *, num_heads, mask=None, is_causal=False,
                tq_cap=256, tk_cap=256):
    # q: (B, Sq, D); k, v: (B, Sk, D); D = num_heads * d_k (head-packed).
    B, Sq, D = q.shape
    Sk = k.shape[1]
    assert D % num_heads == 0
    d_k = D // num_heads

    has_mask = mask is not None
    tq = _pick_tile(Sq, tq_cap, 8)
    # tk is a lane dim of the mask block when a dense mask is streamed.
    tk = _pick_tile(Sk, tk_cap, 128 if has_mask else 8)
    grid = (B, Sq // tq, Sk // tk)

    q_spec = pl.BlockSpec((None, tq, D), lambda b, qi, ki: (b, qi, 0))
    kv_spec = pl.BlockSpec((None, tk, D), lambda b, qi, ki: (b, ki, 0))
    o_spec = pl.BlockSpec((None, tq, D), lambda b, qi, ki: (b, qi, 0))
    # TODO(synk): pipeline_mode=pl.Buffered(3) on kv_spec once the per-step
    # body is long enough that the extra buffer pays for itself.

    in_specs = [q_spec, kv_spec, kv_spec]
    inputs = [q, k, v]

    mask_heads = 1
    if has_mask:
        m_arr, Bm, Hm = _prep_mask(mask, Sq, Sk)
        mask_heads = Hm
        bsel = (lambda b: b) if Bm > 1 else (lambda b: 0)
        in_specs.append(
            pl.BlockSpec((None, Hm, tq, tk),
                         lambda b, qi, ki: (bsel(b), 0, qi, ki)))
        inputs.append(m_arr)

    kernel = functools.partial(
        _flash_kernel, num_heads=num_heads, d_k=d_k, is_causal=is_causal,
        has_mask=has_mask, mask_heads=mask_heads, tq=tq, tk=tk)

    return pl.pallas_call(
        kernel,
        out_shape=jax.ShapeDtypeStruct((B, Sq, D), q.dtype),
        grid=grid,
        in_specs=in_specs,
        out_specs=o_spec,
        scratch_shapes=[
            pltpu.VMEM((num_heads, tq, 1), jnp.float32),    # running max
            pltpu.VMEM((num_heads, tq, 1), jnp.float32),    # running sum
            pltpu.VMEM((num_heads, tq, d_k), jnp.float32),  # per-head acc
        ],
        compiler_params=pltpu.CompilerParams(
            dimension_semantics=("parallel", "parallel", "arbitrary"),
            vmem_limit_bytes=_VMEM_LIMIT_BYTES),
    )(*inputs)


# ----------------------------------------------------------------------------
# Full module forward
# ----------------------------------------------------------------------------
class MultiHeadAttentionPallas:
    def __init__(self, d_model, num_heads, key, bias=True, dtype=jnp.float32,
                 compute_dtype=None):
        assert d_model % num_heads == 0
        self.d_model = d_model
        self.num_heads = num_heads
        self.d_k = d_model // num_heads
        self.scale = math.sqrt(self.d_k)
        self.compute_dtype = compute_dtype

        ks = jax.random.split(key, 8)
        bound = 1.0 / math.sqrt(d_model)  # matches nn.Linear default init range

        def w(k):  # stored as (in, out) == W^T of the PyTorch (out, in) weight
            return jax.random.uniform(k, (d_model, d_model), dtype, -bound, bound)

        def b(k):
            return jax.random.uniform(k, (d_model,), dtype, -bound, bound)

        # Master (unscaled, f32) parameters — PyTorch-equivalent semantics.
        self.wq, self.bq = w(ks[0]), b(ks[1])
        self.wk, self.bk = w(ks[2]), b(ks[3])
        self.wv, self.bv = w(ks[4]), b(ks[5])
        self.wo, self.bo = w(ks[6]), b(ks[7])

        cd = compute_dtype if compute_dtype is not None else dtype
        inv_scale = 1.0 / self.scale
        # Fold 1/sqrt(d_k) into the Q projection (zero runtime cost).
        self._wq = (self.wq * inv_scale).astype(cd)
        self._wk = self.wk.astype(cd)
        self._wv = self.wv.astype(cd)
        self._wo = self.wo.astype(cd)
        self._bq = (self.bq * inv_scale).astype(jnp.float32)
        self._bk = self.bk.astype(jnp.float32)
        self._bv = self.bv.astype(jnp.float32)
        self._bo = self.bo.astype(jnp.float32)

        # Pre-fused weights for shared-input fast paths.
        self._w_qkv = jnp.concatenate([self._wq, self._wk, self._wv], axis=1)
        self._b_qkv = jnp.concatenate([self._bq, self._bk, self._bv])
        self._w_kv = jnp.concatenate([self._wk, self._wv], axis=1)
        self._b_kv = jnp.concatenate([self._bk, self._bv])

    def __call__(self, query, key, value, mask=None, is_causal=False):
        B, Sq, D = query.shape
        Sk = key.shape[1]
        in_dtype = query.dtype
        cd = self.compute_dtype if self.compute_dtype is not None else in_dtype

        q_in = query.reshape(B * Sq, D).astype(cd)

        # Fused projections when inputs are shared (self-attention / shared KV).
        # TODO(synk): when D % 128 == 0, index Q/K/V straight out of the fused
        # (B*Sq, 3D) slab via BlockSpec lane offsets to drop these slice copies.
        if (query is key) and (key is value):
            qkv = pallas_linear(q_in, self._w_qkv, self._b_qkv)
            q2d, k2d, v2d = qkv[:, :D], qkv[:, D:2 * D], qkv[:, 2 * D:]
        elif key is value:
            kv_in = key.reshape(B * Sk, D).astype(cd)
            q2d = pallas_linear(q_in, self._wq, self._bq)
            kv = pallas_linear(kv_in, self._w_kv, self._b_kv)
            k2d, v2d = kv[:, :D], kv[:, D:]
        else:
            q2d = pallas_linear(q_in, self._wq, self._bq)
            k2d = pallas_linear(key.reshape(B * Sk, D).astype(cd),
                                self._wk, self._bk)
            v2d = pallas_linear(value.reshape(B * Sk, D).astype(cd),
                                self._wv, self._bv)

        # Head-packed (B, S, D) layout flows straight into the attention
        # kernel and back out: no (B, H, S, dk) transpose passes over HBM.
        attn = pallas_sdpa(q2d.reshape(B, Sq, D), k2d.reshape(B, Sk, D),
                           v2d.reshape(B, Sk, D),
                           num_heads=self.num_heads, mask=mask,
                           is_causal=is_causal)

        out = pallas_linear(attn.reshape(B * Sq, D), self._wo, self._bo,
                            out_dtype=in_dtype)
        return out.reshape(B, Sq, D)


# ----------------------------------------------------------------------------
# Pure-JAX reference (mirrors the PyTorch forward, eval mode)
# ----------------------------------------------------------------------------
def reference_forward(m, query, key, value, mask=None):
    B, Sq, D = query.shape
    Sk = key.shape[1]
    H, dk = m.num_heads, m.d_k
    q = query @ m.wq + m.bq
    k = key @ m.wk + m.bk
    v = value @ m.wv + m.bv
    Q = q.reshape(B, Sq, H, dk).transpose(0, 2, 1, 3)
    K = k.reshape(B, Sk, H, dk).transpose(0, 2, 1, 3)
    V = v.reshape(B, Sk, H, dk).transpose(0, 2, 1, 3)
    scores = jnp.einsum("bhqd,bhkd->bhqk", Q, K) / m.scale
    if mask is not None:
        scores = jnp.where(mask == 0, -1e9, scores)
    w = jax.nn.softmax(scores, axis=-1)
    attn = jnp.einsum("bhqk,bhkd->bhqd", w, V)
    attn = attn.transpose(0, 2, 1, 3).reshape(B, Sq, D)
    return attn @ m.wo + m.bo


if __name__ == "__main__":
    B, S, D, H = 2, 8, 32, 4
    root = jax.random.PRNGKey(0)
    k_param, k_q, k_k, k_v = jax.random.split(root, 4)

    mha = MultiHeadAttentionPallas(d_model=D, num_heads=H, key=k_param)

    # 1) self-attention, no mask: fused QKV projection + mask-free flash SDPA
    x = jax.random.normal(k_q, (B, S, D), jnp.float32)
    out = jax.block_until_ready(mha(x, x, x))
    ref = reference_forward(mha, x, x, x)
    assert out.shape == (B, S, D)
    assert jnp.allclose(out, ref, atol=2e-2, rtol=2e-2), "self-attn mismatch"

    # 2) distinct q/k/v with a dense causal (1,1,S,S) mask streamed as int8
    query = jax.random.normal(k_q, (B, S, D), jnp.float32)
    key_t = jax.random.normal(k_k, (B, S, D), jnp.float32)
    value = jax.random.normal(k_v, (B, S, D), jnp.float32)
    causal = jnp.tril(jnp.ones((S, S), jnp.int32))[None, None]  # (1,1,S,S)
    out_m = jax.block_until_ready(mha(query, key_t, value, mask=causal))
    ref_m = reference_forward(mha, query, key_t, value, mask=causal)
    assert jnp.allclose(out_m, ref_m, atol=2e-2, rtol=2e-2), "masked mismatch"

    # 3) in-kernel causal mask (no mask tensor in HBM, masked-tile skipping)
    out_c = jax.block_until_ready(mha(x, x, x, is_causal=True))
    ref_c = reference_forward(mha, x, x, x, mask=causal)
    assert jnp.allclose(out_c, ref_c, atol=2e-2, rtol=2e-2), "causal mismatch"

    # 4) bf16 MXU operands, f32 softmax state / accumulation (v6e/v7x path)
    mha_bf16 = MultiHeadAttentionPallas(d_model=D, num_heads=H, key=k_param,
                                        compute_dtype=jnp.bfloat16)
    out_b = jax.block_until_ready(mha_bf16(x, x, x))
    ref_b = reference_forward(mha_bf16, x, x, x)
    assert jnp.allclose(out_b, ref_b, atol=1e-1, rtol=1e-1), "bf16 mismatch"

    print("KERNEL_OK")
</pallas_src>

<mosaic_0001>
module attributes {stable_mosaic.version = 11 : i64} {
  func.func @_linear_kernel(%arg0: i32, %arg1: i32, %arg2: i32, %arg3: memref<16x32xf32, #tpu.memory_space<vmem>>, %arg4: memref<32x96xf32, #tpu.memory_space<vmem>>, %arg5: memref<1x96xf32, #tpu.memory_space<vmem>>, %arg6: memref<16x96xf32, #tpu.memory_space<vmem>>, %arg7: memref<16x96xf32, #tpu.memory_space<vmem>>) attributes {dimension_semantics = [#tpu.dimension_semantics<parallel>, #tpu.dimension_semantics<parallel>, #tpu.dimension_semantics<arbitrary>], iteration_bounds = array<i64: 1, 1, 1>, scalar_prefetch = 0 : i64, scratch_operands = 1 : i64, tpu.core_type = #tpu.core_type<tc>, window_params = [{transform_indices = @transform_0, window_bounds = array<i64: 16, 32>}, {transform_indices = @transform_1, window_bounds = array<i64: 32, 96>}, {transform_indices = @transform_2, window_bounds = array<i64: 1, 96>}, {transform_indices = @transform_3, window_bounds = array<i64: 16, 96>}]} {
    %c0_i32 = arith.constant 0 : i32
    %0 = arith.cmpi eq, %arg2, %c0_i32 : i32
    %1 = arith.extui %0 : i1 to i32
    %c0_i32_0 = arith.constant 0 : i32
    %2 = arith.cmpi ne, %1, %c0_i32_0 : i32
    scf.if %2 {
      %cst_10 = arith.constant 0.000000e+00 : f32
      %12 = vector.broadcast %cst_10 : f32 to vector<16x96xf32>
      %c0_11 = arith.constant 0 : index
      %c0_12 = arith.constant 0 : index
      %13 = vector.load %arg7[%c0_11, %c0_12] : memref<16x96xf32, #tpu.memory_space<vmem>>, vector<16x96xf32>
      tpu.vector_store %arg7[%c0_11, %c0_12], %12 {strides = array<i32>} : memref<16x96xf32, #tpu.memory_space<vmem>>, vector<16x96xf32>,
    } else {
    }
    %c0 = arith.constant 0 : index
    %c0_1 = arith.constant 0 : index
    %3 = vector.load %arg7[%c0, %c0_1] : memref<16x96xf32, #tpu.memory_space<vmem>>, vector<16x96xf32>
    %c0_2 = arith.constant 0 : index
    %c0_3 = arith.constant 0 : index
    %4 = vector.load %arg3[%c0_2, %c0_3] : memref<16x32xf32, #tpu.memory_space<vmem>>, vector<16x32xf32>
    %c0_4 = arith.constant 0 : index
    %c0_5 = arith.constant 0 : index
    %5 = vector.load %arg4[%c0_4, %c0_5] : memref<32x96xf32, #tpu.memory_space<vmem>>, vector<32x96xf32>
    %cst = arith.constant dense<0.000000e+00> : vector<16x96xf32>
    %6 = tpu.matmul %4, %5, %cst {dimension_numbers = #tpu.dot_dimension_numbers<[1], [0], [0], [1], [0, 0, 1, 1], [], []>} : vector<16x32xf32>, vector<32x96xf32>, vector<16x96xf32> -> vector<16x96xf32>
    %7 = arith.addf %3, %6 : vector<16x96xf32>
    %c0_6 = arith.constant 0 : index
    %c0_7 = arith.constant 0 : index
    %8 = vector.load %arg7[%c0_6, %c0_7] : memref<16x96xf32, #tpu.memory_space<vmem>>, vector<16x96xf32>
    tpu.vector_store %arg7[%c0_6, %c0_7], %7 {strides = array<i32>} : memref<16x96xf32, #tpu.memory_space<vmem>>, vector<16x96xf32>,
    %c0_i32_8 = arith.constant 0 : i32
    %9 = arith.cmpi eq, %arg2, %c0_i32_8 : i32
    %10 = arith.extui %9 : i1 to i32
    %c0_i32_9 = arith.constant 0 : i32
    %11 = arith.cmpi ne, %10, %c0_i32_9 : i32
    scf.if %11 {
      %c0_10 = arith.constant 0 : index
      %c0_11 = arith.constant 0 : index
      %12 = vector.load %arg7[%c0_10, %c0_11] : memref<16x96xf32, #tpu.memory_space<vmem>>, vector<16x96xf32>
      %c0_12 = arith.constant 0 : index
      %c0_13 = arith.constant 0 : index
      %13 = vector.load %arg5[%c0_12, %c0_13] : memref<1x96xf32, #tpu.memory_space<vmem>>, vector<1x96xf32>
      %14 = vector.broadcast %13 : vector<1x96xf32> to vector<16x96xf32>
      %15 = arith.addf %12, %14 : vector<16x96xf32>
      %c0_14 = arith.constant 0 : index
      %c0_15 = arith.constant 0 : index
      %16 = vector.load %arg6[%c0_14, %c0_15] : memref<16x96xf32, #tpu.memory_space<vmem>>, vector<16x96xf32>
      tpu.vector_store %arg6[%c0_14, %c0_15], %15 {strides = array<i32>} : memref<16x96xf32, #tpu.memory_space<vmem>>, vector<16x96xf32>,
    } else {
    }
    return
  }
  func.func @transform_0(%arg0: i32, %arg1: i32, %arg2: i32) -> (i32, i32) {
    %c0_i32 = arith.constant 0 : i32
    return %arg0, %arg2 : i32, i32
  }
  func.func @transform_1(%arg0: i32, %arg1: i32, %arg2: i32) -> (i32, i32) {
    %c0_i32 = arith.constant 0 : i32
    return %arg2, %arg1 : i32, i32
  }
  func.func @transform_2(%arg0: i32, %arg1: i32, %arg2: i32) -> (i32, i32) {
    %c0_i32 = arith.constant 0 : i32
    %c0_i32_0 = arith.constant 0 : i32
    return %c0_i32, %arg1 : i32, i32
  }
  func.func @transform_3(%arg0: i32, %arg1: i32, %arg2: i32) -> (i32, i32) {
    %c0_i32 = arith.constant 0 : i32
    return %arg0, %arg1 : i32, i32
  }
}

</mosaic_0001>

<llo_original>
// kernel: tpu_custom_call.1
$region0: #{tpu_custom_call.1}
  #allocation0 [shape = 'u32[]', space=smem, size = 0x4, offset = 0x4, fixed_abs, tag = 'smem constant byte address 0x4 - core index']
  #allocation1 [shape = 'u32[144,128]{1,0:T(1,128)}', space=vmem, size = 0x12000, scoped, tag = 'internal scratch']
  #allocation2 [shape = 'f32[16,96]{1,0:T(8,128)}', space=vmem, size = 0x2000, scoped, tag = 'scratch operand']
  %s0 = inlined_call_operand.hbm [shape: f32[16,32], index: 0, kind: input, shape index: {}]
  %s1 = inlined_call_operand.hbm [shape: f32[32,96], index: 1, kind: input, shape index: {}]
  %s2 = inlined_call_operand.vmem [shape: f32[1,96], index: 2, kind: input, shape index: {}]
  %s3 = inlined_call_operand.hbm [shape: f32[16,96], index: 3, kind: output, shape index: {}]
  %s4 = sld [smem:[#allocation0]]
  $region38: #{tpu_custom_call.1} parent=0
    _
  %s6 = ssub.s32 1, %s4
  %s7 = scalar_select 0, %s6, %s4
  $region1: #{tpu_custom_call.1} parent=0
    #allocation3 [shape = 'u8[8192]{0}', space=vmem, size = 0x2000, scoped, tag = 'input window, operand 0, single buffered']
    #allocation4 [shape = 's32[1]{0}', space=sflag, size = 0x4, scoped, tag = 'scoped memory for tpu_custom_call.1']
    #allocation5 [shape = 's32[1]{0}', space=sflag, size = 0x4, scoped, tag = 'scoped memory for tpu_custom_call.1']
    #allocation6 [shape = 'u8[16384]{0}', space=vmem, size = 0x4000, scoped, tag = 'input window, operand 1, single buffered']
    #allocation7 [shape = 's32[1]{0}', space=sflag, size = 0x4, scoped, tag = 'scoped memory for tpu_custom_call.1']
    #allocation8 [shape = 'u8[8192]{0}', space=vmem, size = 0x2000, scoped, tag = 'output window, operand 0, single buffered']
    %8 = vsyncpa [#allocation4], 0
    %9 = vsyncpa [#allocation7], 0
    %10 = vsyncpa [#allocation5], 0
    // Predicated region
    $region2: #{tpu_custom_call.1} parent=1 // pred_check
      _
    $region3: #{tpu_custom_call.1} parent=1 // pred_check_branch
      %12 = sbr.rel (0) target = $region5
    $region4: #{tpu_custom_call.1} parent=1 // pred_region
      %s14 = ssub.s32 256, 256
      %15 = vsyncadd [#allocation4], %s14
      %s16 = sshll.u32 [#allocation3], 4
      %s17 = int_to_ptr.vmem [resolvable:$true] %s16
      %22 = dma.hbm_to_vmem [thread:$0]  %s0, 256, %s17, [#allocation4], 128, 128, 8
    $region5: #{tpu_custom_call.1} parent=1 // pred_fallthru
      _
    // Predicated region
    $region6: #{tpu_custom_call.1} parent=1 // pred_check
      _
    $region7: #{tpu_custom_call.1} parent=1 // pred_check_branch
      %24 = sbr.rel (0) target = $region9
    $region8: #{tpu_custom_call.1} parent=1 // pred_region
      %s26 = ssub.s32 512, 512
      %27 = vsyncadd [#allocation7], %s26
      %s28 = sshll.u32 [#allocation6], 4
      %s29 = int_to_ptr.vmem [resolvable:$true] %s28
      %34 = dma.hbm_to_vmem [thread:$0]  %s1, 512, %s29, [#allocation7], 128, 128, 8
    $region9: #{tpu_custom_call.1} parent=1 // pred_fallthru
      _
    // Predicated region
    $region10: #{tpu_custom_call.1} parent=1 // pred_check
      _
    $region11: #{tpu_custom_call.1} parent=1 // pred_check_branch
      %36 = sbr.rel (0) target = $region13
    $region12: #{tpu_custom_call.1} parent=1 // pred_region
      _
    $region13: #{tpu_custom_call.1} parent=1 // pred_fallthru
      _
    // Predicated region
    $region14: #{tpu_custom_call.1} parent=1 // pred_check
      _
    $region15: #{tpu_custom_call.1} parent=1 // pred_check_branch
      %38 = sbr.rel (0) target = $region17
    $region16: #{tpu_custom_call.1} parent=1 // pred_region
      %39 = dma.done [#allocation4], 256
    $region17: #{tpu_custom_call.1} parent=1 // pred_fallthru
      _
    // Predicated region
    $region18: #{tpu_custom_call.1} parent=1 // pred_check
      _
    $region19: #{tpu_custom_call.1} parent=1 // pred_check_branch
      %41 = sbr.rel (0) target = $region21
    $region20: #{tpu_custom_call.1} parent=1 // pred_region
      %42 = dma.done [#allocation7], 512
    $region21: #{tpu_custom_call.1} parent=1 // pred_fallthru
      _
    %p43 = scmp.eq.s32.totalorder 0, 0
    // Predicated region
    $region22: #{tpu_custom_call.1} parent=1 // pred_check
      %p44 = pneg %p43
    $region23: #{tpu_custom_call.1} parent=1 // pred_check_branch
      %46 = sbr.rel (%p44) target = $region25
    $region24: #{tpu_custom_call.1} parent=1 // pred_region
      %vm47 = vcmask 785408
      %48 = vst.msk [vmem:[#allocation2] sm:$0xff] %vm47, 0.0
      %49 = vst.msk [vmem:[#allocation2 + $0x8] sm:$0xff] %vm47, 0.0
    $region25: #{tpu_custom_call.1} parent=1 // pred_fallthru
      _
    %v50 = vld [vmem:[#allocation2] sm:$0xff]
    %v51 = vld [vmem:[#allocation2 + $0x8] sm:$0xff]
    %v52 = vld [vmem:[#allocation3] sm:$0xff]
    %v53 = vld [vmem:[#allocation3 + $0x8] sm:$0xff]
    %v54 = vld [vmem:[#allocation6] sm:$0xff]
    %v55 = vld [vmem:[#allocation6 + $0x8] sm:$0xff]
    %v56 = vld [vmem:[#allocation6 + $0x10] sm:$0xff]
    %v57 = vld [vmem:[#allocation6 + $0x18] sm:$0xff]
    %vm58 = vcmask 261120
    %v60 = vsel %vm58, %v52, 0
    %v63 = vsel %vm58, %v53, 0
    %65 = vmatprep.subr.mxu0 0.0
    %66 = vmatpush1.msra.mxu0 %v54
    %67 = vmatprep.subr.mxu0 0.0
    %68 = vmatpush1.msra.mxu0 %v55
    %69 = vmatprep.subr.mxu0 0.0
    %70 = vmatpush1.msra.mxu0 %v56
    %71 = vmatprep.subr.mxu0 0.0
    %72 = vmatpush1.msra.mxu0 %v57
    %73 = vmatprep.subr.mxu0 0.0
    %74 = vmatpush1.msra.mxu0 0.0
    %75 = vmatprep.subr.mxu0 0.0
    %76 = vmatpush1.msra.mxu0 0.0
    %77 = vmatprep.subr.mxu0 0.0
    %78 = vmatpush1.msra.mxu0 0.0
    %79 = vmatprep.subr.mxu0 0.0
    %80 = vmatpush1.msra.mxu0 0.0
    %81 = vmatprep.subr.mxu0 0.0
    %82 = vmatpush1.msra.mxu0 0.0
    %83 = vmatprep.subr.mxu0 0.0
    %84 = vmatpush1.msra.mxu0 0.0
    %85 = vmatprep.subr.mxu0 0.0
    %86 = vmatpush1.msra.mxu0 0.0
    %87 = vmatprep.subr.mxu0 0.0
    %88 = vmatpush1.msra.mxu0 0.0
    %89 = vmatprep.subr.mxu0 0.0
    %90 = vmatpush1.msra.mxu0 0.0
    %91 = vmatprep.subr.mxu0 0.0
    %92 = vmatpush1.msra.mxu0 0.0
    %93 = vmatprep.subr.mxu0 0.0
    %94 = vmatpush1.msra.mxu0 0.0
    %95 = vmatprep.subr.mxu0 0.0
    %96 = vmatpush1.msra.mxu0 0.0
    %97 = vmatprep.subr.mxu0 0.0
    %98 = vmatpush1.msra.mxu0 0.0
    %99 = vmatprep.subr.mxu0 0.0
    %100 = vmatpush1.msra.mxu0 0.0
    %101 = vmatprep.subr.mxu0 0.0
    %102 = vmatpush1.msra.mxu0 0.0
    %103 = vmatprep.subr.mxu0 0.0
    %104 = vmatpush1.msra.mxu0 0.0
    %105 = vmatprep.subr.mxu0 0.0
    %106 = vmatpush1.msra.mxu0 0.0
    %107 = vmatprep.subr.mxu0 0.0
    %108 = vmatpush1.msra.mxu0 0.0
    %109 = vmatprep.subr.mxu0 0.0
    %110 = vmatpush1.msra.mxu0 0.0
    %111 = vmatprep.subr.mxu0 0.0
    %112 = vmatpush1.msra.mxu0 0.0
    %113 = vmatprep.subr.mxu0 0.0
    %114 = vmatpush1.msra.mxu0 0.0
    %115 = vmatprep.subr.mxu0 0.0
    %116 = vmatpush1.msra.mxu0 0.0
    %117 = vmatprep.subr.mxu0 0.0
    %118 = vmatpush1.msra.mxu0 0.0
    %119 = vmatprep.subr.mxu0 0.0
    %120 = vmatpush1.msra.mxu0 0.0
    %121 = vmatprep.subr.mxu0 0.0
    %122 = vmatpush1.msra.mxu0 0.0
    %123 = vmatprep.subr.mxu0 0.0
    %124 = vmatpush1.msra.mxu0 0.0
    %125 = vmatprep.subr.mxu0 0.0
    %126 = vmatpush1.msra.mxu0 0.0
    %127 = vmatprep.subr.mxu0 0.0
    %128 = vmatpush1.msra.mxu0 0.0
    %129 = vmatprep.mubr.f32.mxu0 0.0
    %130 = vmatmul.mubr.f32.gmra.mrb[0].mxu0 %v60
    %v131 = vpop.f32.mrb[0].mxu0
    %v132 = vadd.f32 0.0, %v131
    %v133 = vpop.f32.mrb[0].mxu0
    %134 = vmatprep.mubr.f32.mxu0 0.0
    %135 = vmatmul.mubr.f32.gmra.mrb[0].mxu0 %v63
    %v136 = vpop.f32.mrb[0].mxu0
    %v137 = vadd.f32 0.0, %v136
    %v138 = vpop.f32.mrb[0].mxu0
    %139 = vdwg.mxu0
    %v140 = vadd.f32 %v50, %v132
    %v141 = vadd.f32 %v51, %v137
    %vm142 = vcmask 785408
    %143 = vst.msk [vmem:[#allocation2] sm:$0xff] %vm142, %v140
    %144 = vst.msk [vmem:[#allocation2 + $0x8] sm:$0xff] %vm142, %v141
    // Predicated region
    $region26: #{tpu_custom_call.1} parent=1 // pred_check
      %p145 = pneg %p43
    $region27: #{tpu_custom_call.1} parent=1 // pred_check_branch
      %147 = sbr.rel (%p145) target = $region29
    $region28: #{tpu_custom_call.1} parent=1 // pred_region
      %v148 = vld [vmem:[#allocation2] sm:$0xff]
      %v149 = vld [vmem:[#allocation2 + $0x8] sm:$0xff]
      %v150 = vld [vmem:[%s2] sm:$0x1]
      %v152 = vlaneseq
      %v153 = vshrl.u32 %v152, 7
      %v154 = vsub.s32 0, %v153
      %v155 = vrot.slane %v150, %v154
      %v157 = vadd.f32 %v148, %v155
      %v158 = vadd.f32 %v149, %v155
      %159 = vst.msk [vmem:[#allocation8] sm:$0xff] %vm142, %v157
      %160 = vst.msk [vmem:[#allocation8 + $0x8] sm:$0xff] %vm142, %v158
    $region29: #{tpu_custom_call.1} parent=1 // pred_fallthru
      _
    // Predicated region
    $region30: #{tpu_custom_call.1} parent=1 // pred_check
      _
    $region31: #{tpu_custom_call.1} parent=1 // pred_check_branch
      %162 = sbr.rel (0) target = $region33
    $region32: #{tpu_custom_call.1} parent=1 // pred_region
      %s164 = ssub.s32 256, 256
      %165 = vsyncadd [#allocation5], %s164
      %s166 = sshll.u32 [#allocation8], 4
      %s167 = int_to_ptr.vmem [resolvable:$true] %s166
      %172 = dma.vmem_to_hbm [thread:$0]  %s167, 256, %s3, [#allocation5], 128, 128, 8
    $region33: #{tpu_custom_call.1} parent=1 // pred_fallthru
      _
    // Predicated region
    $region34: #{tpu_custom_call.1} parent=1 // pred_check
      _
    $region35: #{tpu_custom_call.1} parent=1 // pred_check_branch
      %174 = sbr.rel (0) target = $region37
    $region36: #{tpu_custom_call.1} parent=1 // pred_region
      %175 = dma.done [#allocation5], 256
    $region37: #{tpu_custom_call.1} parent=1 // pred_fallthru
      _
    %176 = vsyncpa [#allocation4], 1
    %177 = vsyncpa [#allocation7], 1
    %178 = vsyncpa [#allocation5], 1

</llo_original>
